<compile_context>
chip_gen: v6e
topology: v6e:2x2x1
jax: 0.10.0
libtpu: 0.0.40
codegen_flags: <defaults>
</compile_context>

<pallas_src>
import functools

import numpy as np
import jax
import jax.numpy as jnp
from jax.experimental import pallas as pl
from jax.experimental.pallas import tpu as pltpu


_PW = 24      # parameter-slab lane width (widest packed matrix / mask)
_ROWS = 24    # output rows per sample  (row v covers deconv0 positions 4v..4v+3)
_WIN = 18     # input positions gathered per row:  x[4v-4 .. 4v+13]


def _align8(n):
    return (n + 7) // 8 * 8


def _slab_layout(cin):
    """Static, 8-row-aligned offsets of every packed tensor in the param slab."""
    k0 = _WIN * cin
    off, r = {}, 0
    for name, rows in (("W0", _align8(k0)), ("W1", 24), ("Wd1", 16), ("Wd0", 24),
                       ("m0", 24), ("m1", 24), ("a0", 48), ("a1", 48), ("bias", 8)):
        off[name] = r
        r += rows
    return off, r


# ------------------------------ fused kernel --------------------------------

def fused_forward_kernel(x_ref, p_ref, o_ref, *, cin, apply_softmax):
    """Entire ConvDeconv2xNet forward for one batch tile, fully in VMEM.

    x_ref : (TB, 24, 18*Cin) sliding-window slab
            x_slab[b, v, k*Cin + c] = x[b, c, 4v - 4 + k]  (zero out of range)
    p_ref : (R, 24) packed parameter slab (see pack_params)
    o_ref : (TB, 2) probabilities (logits when apply_softmax=False)
    """
    f32 = jnp.float32
    tb = x_ref.shape[0]
    m = tb * _ROWS
    k0 = _WIN * cin
    off, _ = _slab_layout(cin)

    # ---- static, aligned views into the resident parameter slab ------------
    w0 = p_ref[off["W0"]:off["W0"] + k0, 0:24]      # conv0  -> 6 output phases
    w1 = p_ref[off["W1"]:off["W1"] + 24, 0:16]      # conv1  -> [h1[u-1]|h1[u]]
    wd1 = p_ref[off["Wd1"]:off["Wd1"] + 16, 0:8]    # deconv1
    wd0 = p_ref[off["Wd0"]:off["Wd0"] + 24, 0:8]    # deconv0
    m0 = p_ref[off["m0"]:off["m0"] + 24, 0:24]      # 0/1 validity of h0 phases
    m1 = p_ref[off["m1"]:off["m1"] + 24, 0:16]      # 0/1 validity of h1 phases
    a0 = [p_ref[off["a0"] + 24 * o:off["a0"] + 24 * (o + 1), 0:8] for o in (0, 1)]
    a1 = [p_ref[off["a1"] + 24 * o:off["a1"] + 24 * (o + 1), 0:8] for o in (0, 1)]
    bb = off["bias"]
    b0 = p_ref[bb + 0:bb + 1, 0:24]
    b1 = p_ref[bb + 1:bb + 2, 0:16]
    bd1 = p_ref[bb + 2:bb + 3, 0:8]
    bd0 = p_ref[bb + 3:bb + 4, 0:8]
    bl = p_ref[bb + 4:bb + 5, 0:2]

    def mm(a3, w, b):
        # (TB, 24, K) x (K, N) + (1, N): batch folded into M -> one plain dot.
        out = jnp.dot(a3.reshape(m, a3.shape[-1]), w,
                      preferred_element_type=f32) + b
        return out.reshape(tb, _ROWS, w.shape[-1])

    x = x_ref[...]                                              # (TB, 24, 18*Cin)

    # conv0 + ReLU: lanes q*4+co hold h0[2v-2+q][co], q = 0..5  (24 lanes).
    h0 = jnp.maximum(mm(x, w0, b0), 0.0) * m0[None]
    # conv1 + ReLU: lanes r*8+co hold h1[u-1+r][co], r = 0..1   (16 lanes).
    h1 = jnp.maximum(mm(h0, w1, b1), 0.0) * m1[None]
    # deconv1 + ReLU: z1[b, u, 4q+c] = deconv1(h1)[b, c, 2u+q]  (row 23 inert).
    z1 = jnp.maximum(mm(h1, wd1, bd1), 0.0)
    # deconv0 + ReLU: z0[b, v, 2p+c] = deconv0(h0)[b, c, 4v+p].
    z0 = jnp.maximum(mm(h0, wd0, bd0), 0.0)

    # Linear(376, 2): flatten/concat ordering absorbed into packed a0/a1.
    def head(o):
        prod = z0 * a0[o][None] + z1 * a1[o][None]              # (TB, 24, 8)
        return jnp.sum(jnp.sum(prod, axis=2), axis=1, keepdims=True)

    logits = jnp.concatenate([head(0), head(1)], axis=1) + bl   # (TB, 2)

    if apply_softmax:
        mx = jnp.max(logits, axis=-1, keepdims=True)
        e = jnp.exp(logits - mx)
        logits = e / jnp.sum(e, axis=-1, keepdims=True)
    o_ref[...] = logits


# ----------------------------- pallas_call wrapper ---------------------------

@functools.partial(jax.jit, static_argnames=("training",))
def forward_pallas(x_ncl, param_slab, training=False):
    x = x_ncl.astype(jnp.float32)
    bsz, cin, l_in = x.shape
    assert l_in == 100, "Linear(376, 2) forces the input length to be 100"
    off, rows = _slab_layout(cin)
    assert param_slab.shape == (rows, _PW)

    # Only out-of-kernel data movement: one lane-dense sliding-window slab,
    # slab[b, v, k*Cin + c] = x[b, c, 4v - 4 + k]  (zero where out of range).
    xp = jnp.pad(x, ((0, 0), (0, 0), (4, 6)))
    pos = jnp.arange(_ROWS)[:, None] * 4 + jnp.arange(_WIN)[None, :]
    slab = xp[:, :, pos]                                        # (B, Cin, 24, 18)
    slab = slab.transpose(0, 2, 3, 1).reshape(bsz, _ROWS, _WIN * cin)

    # Batch grid: TB capped so per-step VMEM fits every generation's default
    # scoped limit; "parallel" lets v7x's two TensorCores split the batch.
    tb = bsz if bsz <= 64 else 64
    grid = (pl.cdiv(bsz, tb),)

    kernel = functools.partial(fused_forward_kernel, cin=cin,
                               apply_softmax=not training)
    return pl.pallas_call(
        kernel,
        out_shape=jax.ShapeDtypeStruct((bsz, 2), jnp.float32),
        grid=grid,
        in_specs=[
            pl.BlockSpec((tb, _ROWS, _WIN * cin), lambda b: (b, 0, 0)),
            pl.BlockSpec((rows, _PW), lambda b: (0, 0)),   # weights stay resident
        ],
        out_specs=pl.BlockSpec((tb, 2), lambda b: (b, 0)),
        compiler_params=pltpu.CompilerParams(
            dimension_semantics=("parallel",)),
    )(slab, param_slab)


# ----------------------------- parameters ------------------------------------

def init_params(key, in_channels):
    ks = jax.random.split(key, 10)

    def u(k, shape, fan_in):
        s = 1.0 / np.sqrt(fan_in)
        return jax.random.uniform(k, shape, jnp.float32, -s, s)

    return {
        # Conv1d(in_channels, 4, K=8, s=2): weight (Cout, Cin, K)
        "w0": u(ks[0], (4, in_channels, 8), in_channels * 8),
        "b0": u(ks[1], (4,), in_channels * 8),
        # Conv1d(4, 8, K=4, s=2)
        "w1": u(ks[2], (8, 4, 4), 4 * 4),
        "b1": u(ks[3], (8,), 4 * 4),
        # ConvTranspose1d(4, 2, K=4, s=2): weight (Cin, Cout, K)
        "wd0": u(ks[4], (4, 2, 4), 4 * 4),
        "bd0": u(ks[5], (2,), 4 * 4),
        # ConvTranspose1d(8, 4, K=4, s=2)
        "wd1": u(ks[6], (8, 4, 4), 8 * 4),
        "bd1": u(ks[7], (4,), 8 * 4),
        # Linear(376, 2)
        "wl": u(ks[8], (2, 376), 376),
        "bl": u(ks[9], (2,), 376),
    }


def pack_params(p, in_channels):
    """One-time re-packing of the PyTorch-layout parameters into a single
    (R, 24) f32 slab: per-layer matmul weights with all taps / output phases
    folded in, 0/1 validity masks, tiled biases and the permuted linear head."""
    cin = in_channels
    k0 = _WIN * cin
    off, rows = _slab_layout(cin)

    w0 = np.asarray(p["w0"], np.float32)     # (4, Cin, 8)   Conv1d (O, I, K)
    w1 = np.asarray(p["w1"], np.float32)     # (8, 4, 4)
    wd0 = np.asarray(p["wd0"], np.float32)   # (4, 2, 4)     ConvTranspose1d (I, O, K)
    wd1 = np.asarray(p["wd1"], np.float32)   # (8, 4, 4)
    wl = np.asarray(p["wl"], np.float32)     # (2, 376)

    slab = np.zeros((rows, _PW), np.float32)

    # conv0: output lane q*4+co holds h0[2v-2+q][co]; input lane j*Cin+c holds
    # x[c, 4v-4+j]; phase q uses window positions j = 2q .. 2q+7.
    w0_kc = w0.transpose(2, 1, 0).reshape(8 * cin, 4)           # row k*Cin + c
    W0 = np.zeros((k0, 24), np.float32)
    for q in range(6):
        W0[2 * q * cin:2 * q * cin + 8 * cin, 4 * q:4 * q + 4] = w0_kc
    slab[off["W0"]:off["W0"] + k0, :24] = W0

    # conv1: output lane r*8+co holds h1[u-1+r][co]; h1[t] reads h0[2t .. 2t+3],
    # which live in the h0 row at lanes (2r+k)*4 + ci.
    w1_kc = w1.transpose(2, 1, 0).reshape(16, 8)                # row k*4 + ci
    W1 = np.zeros((24, 16), np.float32)
    W1[0:16, 0:8] = w1_kc
    W1[8:24, 8:16] = w1_kc
    slab[off["W1"]:off["W1"] + 24, :16] = W1

    # deconv1: z1 lane q*4+co = deconv1_out[co, 2u+q].
    V = [wd1[:, :, k] for k in range(4)]                        # (8, 2? no: 8,4)
    Wd1 = np.zeros((16, 8), np.float32)
    Wd1[0:8, 0:4], Wd1[0:8, 4:8] = V[2], V[3]                   # from h1[u-1]
    Wd1[8:16, 0:4], Wd1[8:16, 4:8] = V[0], V[1]                 # from h1[u]
    slab[off["Wd1"]:off["Wd1"] + 16, :8] = Wd1

    # deconv0: z0 lane p*2+co = deconv0_out[co, 4v+p].
    U = [wd0[:, :, k] for k in range(4)]                        # (4, 2) each
    Wd0 = np.zeros((24, 8), np.float32)
    Wd0[4:8, 0:2], Wd0[4:8, 2:4] = U[2], U[3]                   # from h0[2v-1]
    Wd0[8:12, 0:2], Wd0[8:12, 2:4] = U[0], U[1]                 # from h0[2v]
    Wd0[8:12, 4:6], Wd0[8:12, 6:8] = U[2], U[3]
    Wd0[12:16, 4:6], Wd0[12:16, 6:8] = U[0], U[1]               # from h0[2v+1]
    slab[off["Wd0"]:off["Wd0"] + 24, :8] = Wd0

    # 0/1 validity masks (a phase exists iff its conv output index is in range).
    m0 = np.zeros((24, 24), np.float32)
    for v in range(24):
        for q in range(6):
            if 0 <= 2 * v - 2 + q <= 46:
                m0[v, 4 * q:4 * q + 4] = 1.0
    slab[off["m0"]:off["m0"] + 24, :24] = m0

    m1 = np.zeros((24, 16), np.float32)
    for u in range(24):
        for r in range(2):
            if 0 <= u - 1 + r <= 21:
                m1[u, 8 * r:8 * r + 8] = 1.0
    slab[off["m1"]:off["m1"] + 24, :16] = m1

    # Linear head, permuted to the z0 / z1 lane layouts.  a1 row 23 stays zero
    # so deconv1's inert row 23 never reaches the logits.
    a0 = wl[:, :192].reshape(2, 2, 24, 4).transpose(0, 2, 3, 1).reshape(2, 24, 8)
    a1 = np.zeros((2, 24, 8), np.float32)
    a1[:, :23] = (wl[:, 192:].reshape(2, 4, 23, 2)
                  .transpose(0, 2, 3, 1).reshape(2, 23, 8))
    slab[off["a0"]:off["a0"] + 48, :8] = a0.reshape(48, 8)
    slab[off["a1"]:off["a1"] + 48, :8] = a1.reshape(48, 8)

    # Biases, tiled to the packed output-lane layouts, plus the linear bias.
    bb = off["bias"]
    slab[bb + 0, :24] = np.tile(np.asarray(p["b0"], np.float32), 6)
    slab[bb + 1, :16] = np.tile(np.asarray(p["b1"], np.float32), 2)
    slab[bb + 2, :8] = np.tile(np.asarray(p["bd1"], np.float32), 2)
    slab[bb + 3, :8] = np.tile(np.asarray(p["bd0"], np.float32), 4)
    slab[bb + 4, :2] = np.asarray(p["bl"], np.float32)

    return jnp.asarray(slab)


# ----------------------------- numpy reference -------------------------------

def _ref_conv1d(x, w, b, stride):
    bsz, cin, lin = x.shape
    cout, _, k = w.shape
    lout = (lin - k) // stride + 1
    out = np.zeros((bsz, cout, lout), np.float64)
    for t in range(lout):
        seg = x[:, :, t * stride:t * stride + k]
        out[:, :, t] = np.einsum("bik,oik->bo", seg, w) + b
    return out


def _ref_deconv1d(x, w, b, stride):
    bsz, cin, lin = x.shape
    _, cout, k = w.shape
    lout = (lin - 1) * stride + k
    out = np.zeros((bsz, cout, lout), np.float64)
    for t in range(lin):
        for kk in range(k):
            out[:, :, t * stride + kk] += np.einsum("bi,io->bo", x[:, :, t], w[:, :, kk])
    return out + b[None, :, None]


def forward_reference(x_ncl, p, training=False):
    relu = lambda a: np.maximum(a, 0.0)
    x = np.asarray(x_ncl, np.float64)
    p = {k: np.asarray(v, np.float64) for k, v in p.items()}
    h0 = relu(_ref_conv1d(x, p["w0"], p["b0"], 2))
    h1 = relu(_ref_conv1d(h0, p["w1"], p["b1"], 2))
    h1 = relu(_ref_deconv1d(h1, p["wd1"], p["bd1"], 2))
    h0 = relu(_ref_deconv1d(h0, p["wd0"], p["bd0"], 2))
    h = np.concatenate([h0.reshape(h0.shape[0], -1), h1.reshape(h1.shape[0], -1)], axis=-1)
    y = h @ p["wl"].T + p["bl"]
    if not training:
        e = np.exp(y - y.max(-1, keepdims=True))
        y = e / e.sum(-1, keepdims=True)
    return y


# ----------------------------- main ------------------------------------------

if __name__ == "__main__":
    B, C_IN, L = 2, 4, 100        # L=100 is required by Linear(376, 2)
    key = jax.random.PRNGKey(0)
    k_x, k_p = jax.random.split(key)
    x = jax.random.normal(k_x, (B, C_IN, L), jnp.float32)     # PyTorch NCL input
    params = init_params(k_p, C_IN)
    packed = pack_params(params, C_IN)                        # one-time weight packing

    y = forward_pallas(x, packed)                             # eval path -> softmax
    y = jax.block_until_ready(y)

    y_ref = forward_reference(np.asarray(x), params, training=False)
    assert y.shape == (B, 2)
    np.testing.assert_allclose(np.asarray(y, np.float64), y_ref, rtol=5e-4, atol=1e-5)
    print("KERNEL_OK")
</pallas_src>

<mosaic_0001>
module attributes {stable_mosaic.version = 11 : i64} {
  func.func @fused_forward_kernel(%arg0: i32, %arg1: memref<2x24x72xf32, #tpu.memory_space<vmem>>, %arg2: memref<288x24xf32, #tpu.memory_space<vmem>>, %arg3: memref<2x2xf32, #tpu.memory_space<vmem>>) attributes {dimension_semantics = [#tpu.dimension_semantics<parallel>], iteration_bounds = array<i64: 1>, scalar_prefetch = 0 : i64, scratch_operands = 0 : i64, tpu.core_type = #tpu.core_type<tc>, window_params = [{transform_indices = @transform_0, window_bounds = array<i64: 2, 24, 72>}, {pipeline_mode = #tpu.pipeline_mode<synchronous>, transform_indices = @transform_1, window_bounds = array<i64: 288, 24>}, {transform_indices = @transform_2, window_bounds = array<i64: 2, 2>}]} {
    %c0 = arith.constant 0 : index
    %c0_0 = arith.constant 0 : index
    %0 = vector.load %arg2[%c0, %c0_0] : memref<288x24xf32, #tpu.memory_space<vmem>>, vector<72x24xf32>
    %c72 = arith.constant 72 : index
    %c0_1 = arith.constant 0 : index
    %1 = vector.load %arg2[%c72, %c0_1] : memref<288x24xf32, #tpu.memory_space<vmem>>, vector<24x16xf32>
    %c96 = arith.constant 96 : index
    %c0_2 = arith.constant 0 : index
    %2 = vector.load %arg2[%c96, %c0_2] : memref<288x24xf32, #tpu.memory_space<vmem>>, vector<16x8xf32>
    %c112 = arith.constant 112 : index
    %c0_3 = arith.constant 0 : index
    %3 = vector.load %arg2[%c112, %c0_3] : memref<288x24xf32, #tpu.memory_space<vmem>>, vector<24x8xf32>
    %c136 = arith.constant 136 : index
    %c0_4 = arith.constant 0 : index
    %4 = vector.load %arg2[%c136, %c0_4] : memref<288x24xf32, #tpu.memory_space<vmem>>, vector<24x24xf32>
    %c160 = arith.constant 160 : index
    %c0_5 = arith.constant 0 : index
    %5 = vector.load %arg2[%c160, %c0_5] : memref<288x24xf32, #tpu.memory_space<vmem>>, vector<24x16xf32>
    %c184 = arith.constant 184 : index
    %c0_6 = arith.constant 0 : index
    %6 = vector.load %arg2[%c184, %c0_6] : memref<288x24xf32, #tpu.memory_space<vmem>>, vector<24x8xf32>
    %c208 = arith.constant 208 : index
    %c0_7 = arith.constant 0 : index
    %7 = vector.load %arg2[%c208, %c0_7] : memref<288x24xf32, #tpu.memory_space<vmem>>, vector<24x8xf32>
    %c232 = arith.constant 232 : index
    %c0_8 = arith.constant 0 : index
    %8 = vector.load %arg2[%c232, %c0_8] : memref<288x24xf32, #tpu.memory_space<vmem>>, vector<24x8xf32>
    %c256 = arith.constant 256 : index
    %c0_9 = arith.constant 0 : index
    %9 = vector.load %arg2[%c256, %c0_9] : memref<288x24xf32, #tpu.memory_space<vmem>>, vector<24x8xf32>
    %c280 = arith.constant 280 : index
    %c0_10 = arith.constant 0 : index
    %10 = vector.load %arg2[%c280, %c0_10] : memref<288x24xf32, #tpu.memory_space<vmem>>, vector<1x24xf32>
    %c281 = arith.constant 281 : index
    %c0_11 = arith.constant 0 : index
    %11 = vector.load %arg2[%c281, %c0_11] : memref<288x24xf32, #tpu.memory_space<vmem>>, vector<1x16xf32>
    %c282 = arith.constant 282 : index
    %c0_12 = arith.constant 0 : index
    %12 = vector.load %arg2[%c282, %c0_12] : memref<288x24xf32, #tpu.memory_space<vmem>>, vector<1x8xf32>
    %c283 = arith.constant 283 : index
    %c0_13 = arith.constant 0 : index
    %13 = vector.load %arg2[%c283, %c0_13] : memref<288x24xf32, #tpu.memory_space<vmem>>, vector<1x8xf32>
    %c284 = arith.constant 284 : index
    %c0_14 = arith.constant 0 : index
    %14 = vector.load %arg2[%c284, %c0_14] : memref<288x24xf32, #tpu.memory_space<vmem>>, vector<1x2xf32>
    %c0_15 = arith.constant 0 : index
    %c0_16 = arith.constant 0 : index
    %c0_17 = arith.constant 0 : index
    %15 = vector.load %arg1[%c0_15, %c0_16, %c0_17] : memref<2x24x72xf32, #tpu.memory_space<vmem>>, vector<2x24x72xf32>
    %16 = vector.shape_cast %15 : vector<2x24x72xf32> to vector<48x72xf32>
    %cst = arith.constant dense<0.000000e+00> : vector<48x24xf32>
    %17 = tpu.matmul %16, %0, %cst {dimension_numbers = #tpu.dot_dimension_numbers<[1], [0], [0], [1], [0, 0, 1, 1], [], []>} : vector<48x72xf32>, vector<72x24xf32>, vector<48x24xf32> -> vector<48x24xf32>
    %18 = vector.broadcast %10 : vector<1x24xf32> to vector<48x24xf32>
    %19 = arith.addf %17, %18 : vector<48x24xf32>
    %20 = vector.shape_cast %19 : vector<48x24xf32> to vector<2x24x24xf32>
    %cst_18 = arith.constant 0.000000e+00 : f32
    %21 = vector.broadcast %cst_18 : f32 to vector<2x24x24xf32>
    %22 = arith.maximumf %20, %21 : vector<2x24x24xf32>
    %23 = vector.shape_cast %4 : vector<24x24xf32> to vector<1x24x24xf32>
    %24 = vector.broadcast %23 : vector<1x24x24xf32> to vector<2x24x24xf32>
    %25 = arith.mulf %22, %24 : vector<2x24x24xf32>
    %26 = vector.shape_cast %25 : vector<2x24x24xf32> to vector<48x24xf32>
    %cst_19 = arith.constant dense<0.000000e+00> : vector<48x16xf32>
    %27 = tpu.matmul %26, %1, %cst_19 {dimension_numbers = #tpu.dot_dimension_numbers<[1], [0], [0], [1], [0, 0, 1, 1], [], []>} : vector<48x24xf32>, vector<24x16xf32>, vector<48x16xf32> -> vector<48x16xf32>
    %28 = vector.broadcast %11 : vector<1x16xf32> to vector<48x16xf32>
    %29 = arith.addf %27, %28 : vector<48x16xf32>
    %30 = vector.shape_cast %29 : vector<48x16xf32> to vector<2x24x16xf32>
    %cst_20 = arith.constant 0.000000e+00 : f32
    %31 = vector.broadcast %cst_20 : f32 to vector<2x24x16xf32>
    %32 = arith.maximumf %30, %31 : vector<2x24x16xf32>
    %33 = vector.shape_cast %5 : vector<24x16xf32> to vector<1x24x16xf32>
    %34 = vector.broadcast %33 : vector<1x24x16xf32> to vector<2x24x16xf32>
    %35 = arith.mulf %32, %34 : vector<2x24x16xf32>
    %36 = vector.shape_cast %35 : vector<2x24x16xf32> to vector<48x16xf32>
    %cst_21 = arith.constant dense<0.000000e+00> : vector<48x8xf32>
    %37 = tpu.matmul %36, %2, %cst_21 {dimension_numbers = #tpu.dot_dimension_numbers<[1], [0], [0], [1], [0, 0, 1, 1], [], []>} : vector<48x16xf32>, vector<16x8xf32>, vector<48x8xf32> -> vector<48x8xf32>
    %38 = vector.broadcast %12 : vector<1x8xf32> to vector<48x8xf32>
    %39 = arith.addf %37, %38 : vector<48x8xf32>
    %40 = vector.shape_cast %39 : vector<48x8xf32> to vector<2x24x8xf32>
    %cst_22 = arith.constant 0.000000e+00 : f32
    %41 = vector.broadcast %cst_22 : f32 to vector<2x24x8xf32>
    %42 = arith.maximumf %40, %41 : vector<2x24x8xf32>
    %43 = vector.shape_cast %25 : vector<2x24x24xf32> to vector<48x24xf32>
    %cst_23 = arith.constant dense<0.000000e+00> : vector<48x8xf32>
    %44 = tpu.matmul %43, %3, %cst_23 {dimension_numbers = #tpu.dot_dimension_numbers<[1], [0], [0], [1], [0, 0, 1, 1], [], []>} : vector<48x24xf32>, vector<24x8xf32>, vector<48x8xf32> -> vector<48x8xf32>
    %45 = vector.broadcast %13 : vector<1x8xf32> to vector<48x8xf32>
    %46 = arith.addf %44, %45 : vector<48x8xf32>
    %47 = vector.shape_cast %46 : vector<48x8xf32> to vector<2x24x8xf32>
    %cst_24 = arith.constant 0.000000e+00 : f32
    %48 = vector.broadcast %cst_24 : f32 to vector<2x24x8xf32>
    %49 = arith.maximumf %47, %48 : vector<2x24x8xf32>
    %50 = vector.shape_cast %6 : vector<24x8xf32> to vector<1x24x8xf32>
    %51 = vector.broadcast %50 : vector<1x24x8xf32> to vector<2x24x8xf32>
    %52 = arith.mulf %49, %51 : vector<2x24x8xf32>
    %53 = vector.shape_cast %8 : vector<24x8xf32> to vector<1x24x8xf32>
    %54 = vector.broadcast %53 : vector<1x24x8xf32> to vector<2x24x8xf32>
    %55 = arith.mulf %42, %54 : vector<2x24x8xf32>
    %56 = arith.addf %52, %55 : vector<2x24x8xf32>
    %cst_25 = arith.constant dense<0.000000e+00> : vector<2x24xf32>
    %57 = vector.multi_reduction <add>, %56, %cst_25 [2] : vector<2x24x8xf32> to vector<2x24xf32>
    %cst_26 = arith.constant dense<0.000000e+00> : vector<2xf32>
    %58 = vector.multi_reduction <add>, %57, %cst_26 [1] : vector<2x24xf32> to vector<2xf32>
    %59 = vector.shape_cast %58 : vector<2xf32> to vector<2x1xf32>
    %60 = vector.shape_cast %7 : vector<24x8xf32> to vector<1x24x8xf32>
    %61 = vector.broadcast %60 : vector<1x24x8xf32> to vector<2x24x8xf32>
    %62 = arith.mulf %49, %61 : vector<2x24x8xf32>
    %63 = vector.shape_cast %9 : vector<24x8xf32> to vector<1x24x8xf32>
    %64 = vector.broadcast %63 : vector<1x24x8xf32> to vector<2x24x8xf32>
    %65 = arith.mulf %42, %64 : vector<2x24x8xf32>
    %66 = arith.addf %62, %65 : vector<2x24x8xf32>
    %cst_27 = arith.constant dense<0.000000e+00> : vector<2x24xf32>
    %67 = vector.multi_reduction <add>, %66, %cst_27 [2] : vector<2x24x8xf32> to vector<2x24xf32>
    %cst_28 = arith.constant dense<0.000000e+00> : vector<2xf32>
    %68 = vector.multi_reduction <add>, %67, %cst_28 [1] : vector<2x24xf32> to vector<2xf32>
    %69 = vector.shape_cast %68 : vector<2xf32> to vector<2x1xf32>
    %70 = tpu.concatenate %59, %69 in 1 : vector<2x1xf32>, vector<2x1xf32> -> vector<2x2xf32>
    %71 = vector.broadcast %14 : vector<1x2xf32> to vector<2x2xf32>
    %72 = arith.addf %70, %71 : vector<2x2xf32>
    %cst_29 = arith.constant dense<0xFF800000> : vector<2xf32>
    %73 = vector.multi_reduction <maximumf>, %72, %cst_29 [1] : vector<2x2xf32> to vector<2xf32>
    %74 = vector.shape_cast %73 : vector<2xf32> to vector<2x1xf32>
    %75 = vector.broadcast %74 : vector<2x1xf32> to vector<2x2xf32>
    %76 = arith.subf %72, %75 : vector<2x2xf32>
    %77 = math.exp %76 : vector<2x2xf32>
    %cst_30 = arith.constant dense<0.000000e+00> : vector<2xf32>
    %78 = vector.multi_reduction <add>, %77, %cst_30 [1] : vector<2x2xf32> to vector<2xf32>
    %79 = vector.shape_cast %78 : vector<2xf32> to vector<2x1xf32>
    %80 = vector.broadcast %79 : vector<2x1xf32> to vector<2x2xf32>
    %81 = arith.divf %77, %80 : vector<2x2xf32>
    %c0_31 = arith.constant 0 : index
    %c0_32 = arith.constant 0 : index
    %82 = vector.load %arg3[%c0_31, %c0_32] : memref<2x2xf32, #tpu.memory_space<vmem>>, vector<2x2xf32>
    tpu.vector_store %arg3[%c0_31, %c0_32], %81 {strides = array<i32>} : memref<2x2xf32, #tpu.memory_space<vmem>>, vector<2x2xf32>,
    return
  }
  func.func @transform_0(%arg0: i32) -> (i32, i32, i32) {
    %c0_i32 = arith.constant 0 : i32
    %c0_i32_0 = arith.constant 0 : i32
    %c0_i32_1 = arith.constant 0 : i32
    return %arg0, %c0_i32, %c0_i32_0 : i32, i32, i32
  }
  func.func @transform_1(%arg0: i32) -> (i32, i32) {
    %c0_i32 = arith.constant 0 : i32
    %c0_i32_0 = arith.constant 0 : i32
    %c0_i32_1 = arith.constant 0 : i32
    return %c0_i32, %c0_i32_0 : i32, i32
  }
  func.func @transform_2(%arg0: i32) -> (i32, i32) {
    %c0_i32 = arith.constant 0 : i32
    %c0_i32_0 = arith.constant 0 : i32
    return %arg0, %c0_i32 : i32, i32
  }
}

</mosaic_0001>

<llo_original>
// kernel: forward_pallas.1
$region0: #{forward_pallas.1}
  #allocation0 [shape = 'u32[]', space=smem, size = 0x4, offset = 0x4, fixed_abs, tag = 'smem constant byte address 0x4 - core index']
  #allocation1 [shape = 'u32[144,128]{1,0:T(1,128)}', space=vmem, size = 0x12000, scoped, tag = 'internal scratch']
  %s0 = inlined_call_operand.vmem [shape: f32[2,24,72], index: 0, kind: input, shape index: {}]
  %s1 = inlined_call_operand.vmem [shape: f32[288,24], index: 1, kind: input, shape index: {}]
  %s2 = inlined_call_operand.hbm [shape: f32[2,2], index: 2, kind: output, shape index: {}]
  %s3 = sld [smem:[#allocation0]]
  $region18: #{forward_pallas.1} parent=0
    _
  %s5 = ssub.s32 1, %s3
  %s6 = scalar_select 0, %s5, %s3
  $region1: #{forward_pallas.1} parent=0
    #allocation2 [shape = 'u8[1024]{0}', space=vmem, size = 0x400, scoped, tag = 'output window, operand 0, single buffered']
    #allocation3 [shape = 's32[1]{0}', space=sflag, size = 0x4, scoped, tag = 'scoped memory for forward_pallas.1']
    %7 = vsyncpa [#allocation3], 0
    // Predicated region
    $region2: #{forward_pallas.1} parent=1 // pred_check
      _
    $region3: #{forward_pallas.1} parent=1 // pred_check_branch
      %9 = sbr.rel (0) target = $region5
    $region4: #{forward_pallas.1} parent=1 // pred_region
      _
    $region5: #{forward_pallas.1} parent=1 // pred_fallthru
      _
    // Predicated region
    $region6: #{forward_pallas.1} parent=1 // pred_check
      _
    $region7: #{forward_pallas.1} parent=1 // pred_check_branch
      %11 = sbr.rel (0) target = $region9
    $region8: #{forward_pallas.1} parent=1 // pred_region
      _
    $region9: #{forward_pallas.1} parent=1 // pred_fallthru
      _
    %v12 = vld [vmem:[%s1] sm:$0xff]
    %v13 = vld [vmem:[%s1 + $0x8] sm:$0xff]
    %v14 = vld [vmem:[%s1 + $0x10] sm:$0xff]
    %v15 = vld [vmem:[%s1 + $0x18] sm:$0xff]
    %v16 = vld [vmem:[%s1 + $0x20] sm:$0xff]
    %v17 = vld [vmem:[%s1 + $0x28] sm:$0xff]
    %v18 = vld [vmem:[%s1 + $0x30] sm:$0xff]
    %v19 = vld [vmem:[%s1 + $0x38] sm:$0xff]
    %v20 = vld [vmem:[%s1 + $0x40] sm:$0xff]
    %v21 = vld [vmem:[%s1 + $0x48] sm:$0xff]
    %v22 = vld [vmem:[%s1 + $0x50] sm:$0xff]
    %v23 = vld [vmem:[%s1 + $0x58] sm:$0xff]
    %v24 = vld [vmem:[%s1 + $0x60] sm:$0xff]
    %v25 = vld [vmem:[%s1 + $0x68] sm:$0xff]
    %v26 = vld [vmem:[%s1 + $0x70] sm:$0xff]
    %v27 = vld [vmem:[%s1 + $0x78] sm:$0xff]
    %v28 = vld [vmem:[%s1 + $0x80] sm:$0xff]
    %v29 = vld [vmem:[%s1 + $0x88] sm:$0xff]
    %v30 = vld [vmem:[%s1 + $0x90] sm:$0xff]
    %v31 = vld [vmem:[%s1 + $0x98] sm:$0xff]
    %v32 = vld [vmem:[%s1 + $0xa0] sm:$0xff]
    %v33 = vld [vmem:[%s1 + $0xa8] sm:$0xff]
    %v34 = vld [vmem:[%s1 + $0xb0] sm:$0xff]
    %v35 = vld [vmem:[%s1 + $0xb8] sm:$0xff]
    %v36 = vld [vmem:[%s1 + $0xc0] sm:$0xff]
    %v37 = vld [vmem:[%s1 + $0xc8] sm:$0xff]
    %v38 = vld [vmem:[%s1 + $0xd0] sm:$0xff]
    %v39 = vld [vmem:[%s1 + $0xd8] sm:$0xff]
    %v40 = vld [vmem:[%s1 + $0xe0] sm:$0xff]
    %v41 = vld [vmem:[%s1 + $0xe8] sm:$0xff]
    %v42 = vld [vmem:[%s1 + $0xf0] sm:$0xff]
    %v43 = vld [vmem:[%s1 + $0xf8] sm:$0xff]
    %v44 = vld [vmem:[%s1 + $0x100] sm:$0xff]
    %v45 = vld [vmem:[%s1 + $0x108] sm:$0xff]
    %v46 = vld [vmem:[%s1 + $0x110] sm:$0xff]
    %v47 = vld [vmem:[%s1 + $0x118] sm:$0x1]
    %v48 = vld [vmem:[%s1 + $0x119] sm:$0x1]
    %v49 = vld [vmem:[%s1 + $0x11a] sm:$0x1]
    %v50 = vld [vmem:[%s1 + $0x11b] sm:$0x1]
    %v51 = vld [vmem:[%s1 + $0x11c] sm:$0x1]
    %v52 = vld [vmem:[%s0] sm:$0xff]
    %v53 = vld [vmem:[%s0 + $0x8] sm:$0xff]
    %v54 = vld [vmem:[%s0 + $0x10] sm:$0xff]
    %v55 = vld [vmem:[%s0 + $0x18] sm:$0xff]
    %v56 = vld [vmem:[%s0 + $0x20] sm:$0xff]
    %v57 = vld [vmem:[%s0 + $0x28] sm:$0xff]
    %v58 = vlaneseq
    %v59 = vshrl.u32 %v58, 7
    %v60 = vsub.s32 0, %v59
    %v61 = vrot.slane %v47, %v60
    %vm62 = vcmask 588800
    %v64 = vsel %vm62, %v52, 0
    %v67 = vsel %vm62, %v53, 0
    %v70 = vsel %vm62, %v54, 0
    %v73 = vsel %vm62, %v55, 0
    %v76 = vsel %vm62, %v56, 0
    %v79 = vsel %vm62, %v57, 0
    %81 = vmatprep.subr.mxu0 0.0
    %82 = vmatpush1.msra.mxu0 0.0
    %83 = vmatprep.subr.mxu0 0.0
    %84 = vmatpush1.msra.mxu0 0.0
    %85 = vmatprep.subr.mxu0 0.0
    %86 = vmatpush1.msra.mxu0 0.0
    %87 = vmatprep.subr.mxu0 0.0
    %88 = vmatpush1.msra.mxu0 0.0
    %89 = vmatprep.subr.mxu0 0.0
    %90 = vmatpush1.msra.mxu0 0.0
    %91 = vmatprep.subr.mxu0 0.0
    %92 = vmatpush1.msra.mxu0 0.0
    %93 = vmatprep.subr.mxu0 0.0
    %94 = vmatpush1.msra.mxu0 0.0
    %95 = vmatprep.subr.mxu0 0.0
    %96 = vmatpush1.msra.mxu0 %v20
    %97 = vmatprep.subr.mxu0 0.0
    %98 = vmatpush1.msra.mxu0 %v19
    %99 = vmatprep.subr.mxu0 0.0
    %100 = vmatpush1.msra.mxu0 %v18
    %101 = vmatprep.subr.mxu0 0.0
    %102 = vmatpush1.msra.mxu0 %v17
    %103 = vmatprep.subr.mxu0 0.0
    %104 = vmatpush1.msra.mxu0 %v16
    %105 = vmatprep.subr.mxu0 0.0
    %106 = vmatpush1.msra.mxu0 %v15
    %107 = vmatprep.subr.mxu0 0.0
    %108 = vmatpush1.msra.mxu0 %v14
    %109 = vmatprep.subr.mxu0 0.0
    %110 = vmatpush1.msra.mxu0 %v13
    %111 = vmatprep.subr.mxu0 0.0
    %112 = vmatpush1.msra.mxu0 %v12
    %113 = vmatprep.subr.mxu0 0.0
    %114 = vmatpush2.msra.mxu0 0.0
    %115 = vmatprep.subr.mxu0 0.0
    %116 = vmatpush2.msra.mxu0 0.0
    %117 = vmatprep.subr.mxu0 0.0
    %118 = vmatpush2.msra.mxu0 0.0
    %119 = vmatprep.subr.mxu0 0.0
    %120 = vmatpush2.msra.mxu0 0.0
    %121 = vmatprep.subr.mxu0 0.0
    %122 = vmatpush2.msra.mxu0 0.0
    %123 = vmatprep.subr.mxu0 0.0
    %124 = vmatpush2.msra.mxu0 0.0
    %125 = vmatprep.subr.mxu0 0.0
    %126 = vmatpush2.msra.mxu0 0.0
    %127 = vmatprep.subr.mxu0 0.0
    %128 = vmatpush2.msra.mxu0 0.0
    %129 = vmatprep.subr.mxu0 0.0
    %130 = vmatpush2.msra.mxu0 0.0
    %131 = vmatprep.subr.mxu0 0.0
    %132 = vmatpush2.msra.mxu0 0.0
    %133 = vmatprep.subr.mxu0 0.0
    %134 = vmatpush2.msra.mxu0 0.0
    %135 = vmatprep.subr.mxu0 0.0
    %136 = vmatpush2.msra.mxu0 0.0
    %137 = vmatprep.subr.mxu0 0.0
    %138 = vmatpush2.msra.mxu0 0.0
    %139 = vmatprep.subr.mxu0 0.0
    %140 = vmatpush2.msra.mxu0 0.0
    %141 = vmatprep.subr.mxu0 0.0
    %142 = vmatpush2.msra.mxu0 0.0
    %143 = vmatprep.subr.mxu0 0.0
    %144 = vmatpush2.msra.mxu0 0.0
    %145 = vmatprep.mubr.f32.mxu0 0.0
    %146 = vmatmul.mubr.f32.gmra.mxu0 %v64
    %v147 = vpop.f32.mrf.mxu0
    %v148 = vadd.f32 %v61, %v147
    %v149 = vpop.f32.mrf.mxu0
    %150 = vmatprep.mubr.f32.mxu0 0.0
    %151 = vmatmul.mubr.f32.gmra.mxu0 %v67
    %v152 = vpop.f32.mrf.mxu0
    %v153 = vadd.f32 %v61, %v152
    %v154 = vpop.f32.mrf.mxu0
    %155 = vmatprep.mubr.f32.mxu0 0.0
    %156 = vmatmul.mubr.f32.gmra.mxu0 %v70
    %v157 = vpop.f32.mrf.mxu0
    %v158 = vadd.f32 %v61, %v157
    %v159 = vpop.f32.mrf.mxu0
    %160 = vmatprep.mubr.f32.mxu0 0.0
    %161 = vmatmul.mubr.f32.gmra.mxu0 %v73
    %v162 = vpop.f32.mrf.mxu0
    %v163 = vadd.f32 %v61, %v162
    %v164 = vpop.f32.mrf.mxu0
    %165 = vmatprep.mubr.f32.mxu0 0.0
    %166 = vmatmul.mubr.f32.gmra.mxu0 %v76
    %v167 = vpop.f32.mrf.mxu0
    %v168 = vadd.f32 %v61, %v167
    %v169 = vpop.f32.mrf.mxu0
    %170 = vmatprep.mubr.f32.mxu0 0.0
    %171 = vmatmul.mubr.f32.gmra.mxu0 %v79
    %v172 = vpop.f32.mrf.mxu0
    %v173 = vadd.f32 %v61, %v172
    %v174 = vpop.f32.mrf.mxu0
    %175 = vdwg.mxu0
    %v176 = vmax.f32 %v148, 0.0
    %v177 = vmax.f32 %v153, 0.0
    %v178 = vmax.f32 %v158, 0.0
    %v179 = vmax.f32 %v163, 0.0
    %v180 = vmax.f32 %v168, 0.0
    %v181 = vmax.f32 %v173, 0.0
    %v182 = vmul.f32 %v176, %v29
    %v183 = vmul.f32 %v177, %v30
    %v184 = vmul.f32 %v178, %v31
    %v185 = vmul.f32 %v179, %v29
    %v186 = vmul.f32 %v180, %v30
    %v187 = vmul.f32 %v181, %v31
    %v188 = vlaneseq
    %v189 = vshrl.u32 %v188, 7
    %v190 = vsub.s32 0, %v189
    %v191 = vrot.slane %v48, %v190
    %vm192 = vcmask 195584
    %v194 = vsel %vm192, %v182, 0
    %v197 = vsel %vm192, %v183, 0
    %v200 = vsel %vm192, %v184, 0
    %v203 = vsel %vm192, %v185, 0
    %v206 = vsel %vm192, %v186, 0
    %v209 = vsel %vm192, %v187, 0
    %211 = vmatprep.subr.mxu0 0.0
    %212 = vmatpush1.msra.mxu0 0.0
    %213 = vmatprep.subr.mxu0 0.0
    %214 = vmatpush1.msra.mxu0 0.0
    %215 = vmatprep.subr.mxu0 0.0
    %216 = vmatpush1.msra.mxu0 0.0
    %217 = vmatprep.subr.mxu0 0.0
    %218 = vmatpush1.msra.mxu0 0.0
    %219 = vmatprep.subr.mxu0 0.0
    %220 = vmatpush1.msra.mxu0 0.0
    %221 = vmatprep.subr.mxu0 0.0
    %222 = vmatpush1.msra.mxu0 0.0
    %223 = vmatprep.subr.mxu0 0.0
    %224 = vmatpush1.msra.mxu0 0.0
    %225 = vmatprep.subr.mxu0 0.0
    %226 = vmatpush1.msra.mxu0 0.0
    %227 = vmatprep.subr.mxu0 0.0
    %228 = vmatpush1.msra.mxu0 0.0
    %229 = vmatprep.subr.mxu0 0.0
    %230 = vmatpush1.msra.mxu0 0.0
    %231 = vmatprep.subr.mxu0 0.0
    %232 = vmatpush1.msra.mxu0 0.0
    %233 = vmatprep.subr.mxu0 0.0
    %234 = vmatpush1.msra.mxu0 0.0
    %235 = vmatprep.subr.mxu0 0.0
    %236 = vmatpush1.msra.mxu0 0.0
    %237 = vmatprep.subr.mxu0 0.0
    %238 = vmatpush1.msra.mxu0 %v23
    %239 = vmatprep.subr.mxu0 0.0
    %240 = vmatpush1.msra.mxu0 %v22
    %241 = vmatprep.subr.mxu0 0.0
    %242 = vmatpush1.msra.mxu0 %v21
    %243 = vmatprep.subr.mxu0 0.0
    %244 = vmatpush2.msra.mxu0 0.0
    %245 = vmatprep.subr.mxu0 0.0
    %246 = vmatpush2.msra.mxu0 0.0
    %247 = vmatprep.subr.mxu0 0.0
    %248 = vmatpush2.msra.mxu0 0.0
    %249 = vmatprep.subr.mxu0 0.0
    %250 = vmatpush2.msra.mxu0 0.0
    %251 = vmatprep.subr.mxu0 0.0
    %252 = vmatpush2.msra.mxu0 0.0
    %253 = vmatprep.subr.mxu0 0.0
    %254 = vmatpush2.msra.mxu0 0.0
    %255 = vmatprep.subr.mxu0 0.0
    %256 = vmatpush2.msra.mxu0 0.0
    %257 = vmatprep.subr.mxu0 0.0
    %258 = vmatpush2.msra.mxu0 0.0
    %259 = vmatprep.subr.mxu0 0.0
    %260 = vmatpush2.msra.mxu0 0.0
    %261 = vmatprep.subr.mxu0 0.0
    %262 = vmatpush2.msra.mxu0 0.0
    %263 = vmatprep.subr.mxu0 0.0
    %264 = vmatpush2.msra.mxu0 0.0
    %265 = vmatprep.subr.mxu0 0.0
    %266 = vmatpush2.msra.mxu0 0.0
    %267 = vmatprep.subr.mxu0 0.0
    %268 = vmatpush2.msra.mxu0 0.0
    %269 = vmatprep.subr.mxu0 0.0
    %270 = vmatpush2.msra.mxu0 0.0
    %271 = vmatprep.subr.mxu0 0.0
    %272 = vmatpush2.msra.mxu0 0.0
    %273 = vmatprep.subr.mxu0 0.0
    %274 = vmatpush2.msra.mxu0 0.0
    %275 = vmatprep.mubr.f32.mxu0 0.0
    %276 = vmatmul.mubr.f32.gmra.mxu0 %v194
    %v277 = vpop.f32.mrf.mxu0
    %v278 = vadd.f32 %v191, %v277
    %v279 = vpop.f32.mrf.mxu0
    %280 = vmatprep.mubr.f32.mxu0 0.0
    %281 = vmatmul.mubr.f32.gmra.mxu0 %v197
    %v282 = vpop.f32.mrf.mxu0
    %v283 = vadd.f32 %v191, %v282
    %v284 = vpop.f32.mrf.mxu0
    %285 = vmatprep.mubr.f32.mxu0 0.0
    %286 = vmatmul.mubr.f32.gmra.mxu0 %v200
    %v287 = vpop.f32.mrf.mxu0
    %v288 = vadd.f32 %v191, %v287
    %v289 = vpop.f32.mrf.mxu0
    %290 = vmatprep.mubr.f32.mxu0 0.0
    %291 = vmatmul.mubr.f32.gmra.mxu0 %v203
    %v292 = vpop.f32.mrf.mxu0
    %v293 = vadd.f32 %v191, %v292
    %v294 = vpop.f32.mrf.mxu0
    %295 = vmatprep.mubr.f32.mxu0 0.0
    %296 = vmatmul.mubr.f32.gmra.mxu0 %v206
    %v297 = vpop.f32.mrf.mxu0
    %v298 = vadd.f32 %v191, %v297
    %v299 = vpop.f32.mrf.mxu0
    %300 = vmatprep.mubr.f32.mxu0 0.0
    %301 = vmatmul.mubr.f32.gmra.mxu0 %v209
    %v302 = vpop.f32.mrf.mxu0
    %v303 = vadd.f32 %v191, %v302
    %v304 = vpop.f32.mrf.mxu0
    %305 = vdwg.mxu0
    %v306 = vmax.f32 %v278, 0.0
    %v307 = vmax.f32 %v283, 0.0
    %v308 = vmax.f32 %v288, 0.0
    %v309 = vmax.f32 %v293, 0.0
    %v310 = vmax.f32 %v298, 0.0
    %v311 = vmax.f32 %v303, 0.0
    %v312 = vmul.f32 %v306, %v32
    %v313 = vmul.f32 %v307, %v33
    %v314 = vmul.f32 %v308, %v34
    %v315 = vmul.f32 %v309, %v32
    %v316 = vmul.f32 %v310, %v33
    %v317 = vmul.f32 %v311, %v34
    %v318 = vlaneseq
    %v319 = vshrl.u32 %v318, 7
    %v320 = vsub.s32 0, %v319
    %v321 = vrot.slane %v49, %v320
    %vm322 = vcmask 130048
    %v324 = vsel %vm322, %v312, 0
    %v327 = vsel %vm322, %v313, 0
    %v330 = vsel %vm322, %v314, 0
    %v333 = vsel %vm322, %v315, 0
    %v336 = vsel %vm322, %v316, 0
    %v339 = vsel %vm322, %v317, 0
    %341 = vmatprep.subr.mxu0 0.0
    %342 = vmatpush1.msra.mxu0 0.0
    %343 = vmatprep.subr.mxu0 0.0
    %344 = vmatpush1.msra.mxu0 0.0
    %345 = vmatprep.subr.mxu0 0.0
    %346 = vmatpush1.msra.mxu0 0.0
    %347 = vmatprep.subr.mxu0 0.0
    %348 = vmatpush1.msra.mxu0 0.0
    %349 = vmatprep.subr.mxu0 0.0
    %350 = vmatpush1.msra.mxu0 0.0
    %351 = vmatprep.subr.mxu0 0.0
    %352 = vmatpush1.msra.mxu0 0.0
    %353 = vmatprep.subr.mxu0 0.0
    %354 = vmatpush1.msra.mxu0 0.0
    %355 = vmatprep.subr.mxu0 0.0
    %356 = vmatpush1.msra.mxu0 0.0
    %357 = vmatprep.subr.mxu0 0.0
    %358 = vmatpush1.msra.mxu0 0.0
    %359 = vmatprep.subr.mxu0 0.0
    %360 = vmatpush1.msra.mxu0 0.0
    %361 = vmatprep.subr.mxu0 0.0
    %362 = vmatpush1.msra.mxu0 0.0
    %363 = vmatprep.subr.mxu0 0.0
    %364 = vmatpush1.msra.mxu0 0.0
    %365 = vmatprep.subr.mxu0 0.0
    %366 = vmatpush1.msra.mxu0 0.0
    %367 = vmatprep.subr.mxu0 0.0
    %368 = vmatpush1.msra.mxu0 0.0
    %369 = vmatprep.subr.mxu0 0.0
    %370 = vmatpush1.msra.mxu0 %v25
    %371 = vmatprep.subr.mxu0 0.0
    %372 = vmatpush1.msra.mxu0 %v24
    %373 = vmatprep.subr.mxu0 0.0
    %374 = vmatpush2.msra.mxu0 0.0
    %375 = vmatprep.subr.mxu0 0.0
    %376 = vmatpush2.msra.mxu0 0.0
    %377 = vmatprep.subr.mxu0 0.0
    %378 = vmatpush2.msra.mxu0 0.0
    %379 = vmatprep.subr.mxu0 0.0
    %380 = vmatpush2.msra.mxu0 0.0
    %381 = vmatprep.subr.mxu0 0.0
    %382 = vmatpush2.msra.mxu0 0.0
    %383 = vmatprep.subr.mxu0 0.0
    %384 = vmatpush2.msra.mxu0 0.0
    %385 = vmatprep.subr.mxu0 0.0
    %386 = vmatpush2.msra.mxu0 0.0
    %387 = vmatprep.subr.mxu0 0.0
    %388 = vmatpush2.msra.mxu0 0.0
    %389 = vmatprep.subr.mxu0 0.0
    %390 = vmatpush2.msra.mxu0 0.0
    %391 = vmatprep.subr.mxu0 0.0
    %392 = vmatpush2.msra.mxu0 0.0
    %393 = vmatprep.subr.mxu0 0.0
    %394 = vmatpush2.msra.mxu0 0.0
    %395 = vmatprep.subr.mxu0 0.0
    %396 = vmatpush2.msra.mxu0 0.0
    %397 = vmatprep.subr.mxu0 0.0
    %398 = vmatpush2.msra.mxu0 0.0
    %399 = vmatprep.subr.mxu0 0.0
    %400 = vmatpush2.msra.mxu0 0.0
    %401 = vmatprep.subr.mxu0 0.0
    %402 = vmatpush2.msra.mxu0 0.0
    %403 = vmatprep.subr.mxu0 0.0
    %404 = vmatpush2.msra.mxu0 0.0
    %405 = vmatprep.mubr.f32.mxu0 0.0
    %406 = vmatmul.mubr.f32.gmra.mxu0 %v324
    %v407 = vpop.f32.mrf.mxu0
    %v408 = vadd.f32 %v321, %v407
    %v409 = vpop.f32.mrf.mxu0
    %410 = vmatprep.mubr.f32.mxu0 0.0
    %411 = vmatmul.mubr.f32.gmra.mxu0 %v327
    %v412 = vpop.f32.mrf.mxu0
    %v413 = vadd.f32 %v321, %v412
    %v414 = vpop.f32.mrf.mxu0
    %415 = vmatprep.mubr.f32.mxu0 0.0
    %416 = vmatmul.mubr.f32.gmra.mxu0 %v330
    %v417 = vpop.f32.mrf.mxu0
    %v418 = vadd.f32 %v321, %v417
    %v419 = vpop.f32.mrf.mxu0
    %420 = vmatprep.mubr.f32.mxu0 0.0
    %421 = vmatmul.mubr.f32.gmra.mxu0 %v333
    %v422 = vpop.f32.mrf.mxu0
    %v423 = vadd.f32 %v321, %v422
    %v424 = vpop.f32.mrf.mxu0
    %425 = vmatprep.mubr.f32.mxu0 0.0
    %426 = vmatmul.mubr.f32.gmra.mxu0 %v336
    %v427 = vpop.f32.mrf.mxu0
    %v428 = vadd.f32 %v321, %v427
    %v429 = vpop.f32.mrf.mxu0
    %430 = vmatprep.mubr.f32.mxu0 0.0
    %431 = vmatmul.mubr.f32.gmra.mxu0 %v339
    %v432 = vpop.f32.mrf.mxu0
    %v433 = vadd.f32 %v321, %v432
    %v434 = vpop.f32.mrf.mxu0
    %435 = vdwg.mxu0
    %v436 = vmax.f32 %v408, 0.0
    %v437 = vmax.f32 %v413, 0.0
    %v438 = vmax.f32 %v418, 0.0
    %v439 = vmax.f32 %v423, 0.0
    %v440 = vmax.f32 %v428, 0.0
    %v441 = vmax.f32 %v433, 0.0
    %v442 = vlaneseq
    %v443 = vshrl.u32 %v442, 7
    %v444 = vsub.s32 0, %v443
    %v445 = vrot.slane %v50, %v444
    %446 = vmatprep.subr.mxu0 0.0
    %447 = vmatpush1.msra.mxu0 0.0
    %448 = vmatprep.subr.mxu0 0.0
    %449 = vmatpush1.msra.mxu0 0.0
    %450 = vmatprep.subr.mxu0 0.0
    %451 = vmatpush1.msra.mxu0 0.0
    %452 = vmatprep.subr.mxu0 0.0
    %453 = vmatpush1.msra.mxu0 0.0
    %454 = vmatprep.subr.mxu0 0.0
    %455 = vmatpush1.msra.mxu0 0.0
    %456 = vmatprep.subr.mxu0 0.0
    %457 = vmatpush1.msra.mxu0 0.0
    %458 = vmatprep.subr.mxu0 0.0
    %459 = vmatpush1.msra.mxu0 0.0
    %460 = vmatprep.subr.mxu0 0.0
    %461 = vmatpush1.msra.mxu0 0.0
    %462 = vmatprep.subr.mxu0 0.0
    %463 = vmatpush1.msra.mxu0 0.0
    %464 = vmatprep.subr.mxu0 0.0
    %465 = vmatpush1.msra.mxu0 0.0
    %466 = vmatprep.subr.mxu0 0.0
    %467 = vmatpush1.msra.mxu0 0.0
    %468 = vmatprep.subr.mxu0 0.0
    %469 = vmatpush1.msra.mxu0 0.0
    %470 = vmatprep.subr.mxu0 0.0
    %471 = vmatpush1.msra.mxu0 0.0
    %472 = vmatprep.subr.mxu0 0.0
    %473 = vmatpush1.msra.mxu0 %v28
    %474 = vmatprep.subr.mxu0 0.0
    %475 = vmatpush1.msra.mxu0 %v27
    %476 = vmatprep.subr.mxu0 0.0
    %477 = vmatpush1.msra.mxu0 %v26
    %478 = vmatprep.subr.mxu0 0.0
    %479 = vmatpush2.msra.mxu0 0.0
    %480 = vmatprep.subr.mxu0 0.0
    %481 = vmatpush2.msra.mxu0 0.0
    %482 = vmatprep.subr.mxu0 0.0
    %483 = vmatpush2.msra.mxu0 0.0
    %484 = vmatprep.subr.mxu0 0.0
    %485 = vmatpush2.msra.mxu0 0.0
    %486 = vmatprep.subr.mxu0 0.0
    %487 = vmatpush2.msra.mxu0 0.0
    %488 = vmatprep.subr.mxu0 0.0
    %489 = vmatpush2.msra.mxu0 0.0
    %490 = vmatprep.subr.mxu0 0.0
    %491 = vmatpush2.msra.mxu0 0.0
    %492 = vmatprep.subr.mxu0 0.0
    %493 = vmatpush2.msra.mxu0 0.0
    %494 = vmatprep.subr.mxu0 0.0
    %495 = vmatpush2.msra.mxu0 0.0
    %496 = vmatprep.subr.mxu0 0.0
    %497 = vmatpush2.msra.mxu0 0.0
    %498 = vmatprep.subr.mxu0 0.0
    %499 = vmatpush2.msra.mxu0 0.0
    %500 = vmatprep.subr.mxu0 0.0
    %501 = vmatpush2.msra.mxu0 0.0
    %502 = vmatprep.subr.mxu0 0.0
    %503 = vmatpush2.msra.mxu0 0.0
    %504 = vmatprep.subr.mxu0 0.0
    %505 = vmatpush2.msra.mxu0 0.0
    %506 = vmatprep.subr.mxu0 0.0
    %507 = vmatpush2.msra.mxu0 0.0
    %508 = vmatprep.subr.mxu0 0.0
    %509 = vmatpush2.msra.mxu0 0.0
    %510 = vmatprep.mubr.f32.mxu0 0.0
    %511 = vmatmul.mubr.f32.gmra.mxu0 %v194
    %v512 = vpop.f32.mrf.mxu0
    %v513 = vadd.f32 %v445, %v512
    %v514 = vpop.f32.mrf.mxu0
    %515 = vmatprep.mubr.f32.mxu0 0.0
    %516 = vmatmul.mubr.f32.gmra.mxu0 %v197
    %v517 = vpop.f32.mrf.mxu0
    %v518 = vadd.f32 %v445, %v517
    %v519 = vpop.f32.mrf.mxu0
    %520 = vmatprep.mubr.f32.mxu0 0.0
    %521 = vmatmul.mubr.f32.gmra.mxu0 %v200
    %v522 = vpop.f32.mrf.mxu0
    %v523 = vadd.f32 %v445, %v522
    %v524 = vpop.f32.mrf.mxu0
    %525 = vmatprep.mubr.f32.mxu0 0.0
    %526 = vmatmul.mubr.f32.gmra.mxu0 %v203
    %v527 = vpop.f32.mrf.mxu0
    %v528 = vadd.f32 %v445, %v527
    %v529 = vpop.f32.mrf.mxu0
    %530 = vmatprep.mubr.f32.mxu0 0.0
    %531 = vmatmul.mubr.f32.gmra.mxu0 %v206
    %v532 = vpop.f32.mrf.mxu0
    %v533 = vadd.f32 %v445, %v532
    %v534 = vpop.f32.mrf.mxu0
    %535 = vmatprep.mubr.f32.mxu0 0.0
    %536 = vmatmul.mubr.f32.gmra.mxu0 %v209
    %v537 = vpop.f32.mrf.mxu0
    %v538 = vadd.f32 %v445, %v537
    %v539 = vpop.f32.mrf.mxu0
    %540 = vdwg.mxu0
    %v541 = vmax.f32 %v513, 0.0
    %v542 = vmax.f32 %v518, 0.0
    %v543 = vmax.f32 %v523, 0.0
    %v544 = vmax.f32 %v528, 0.0
    %v545 = vmax.f32 %v533, 0.0
    %v546 = vmax.f32 %v538, 0.0
    %v547 = vmul.f32 %v541, %v35
    %v548 = vmul.f32 %v542, %v36
    %v549 = vmul.f32 %v543, %v37
    %v550 = vmul.f32 %v544, %v35
    %v551 = vmul.f32 %v545, %v36
    %v552 = vmul.f32 %v546, %v37
    %v553 = vmul.f32 %v436, %v41
    %v554 = vmul.f32 %v437, %v42
    %v555 = vmul.f32 %v438, %v43
    %v556 = vmul.f32 %v439, %v41
    %v557 = vmul.f32 %v440, %v42
    %v558 = vmul.f32 %v441, %v43
    %v559 = vadd.f32 %v547, %v553
    %v560 = vadd.f32 %v548, %v554
    %v561 = vadd.f32 %v549, %v555
    %v562 = vadd.f32 %v550, %v556
    %v563 = vadd.f32 %v551, %v557
    %v564 = vadd.f32 %v552, %v558
    %vm565 = vcmask 64512
    %v566 = vsel %vm565, %v559, 0.0
    %567 = vadd.xlane.f32.xlu0 %v566
    %v568 = vpop.xlane.xlu0 %567
    %v569 = vsel %vm565, %v560, 0.0
    %570 = vadd.xlane.f32.xlu0 %v569
    %v571 = vpop.xlane.xlu0 %570
    %v572 = vsel %vm565, %v561, 0.0
    %573 = vadd.xlane.f32.xlu0 %v572
    %v574 = vpop.xlane.xlu0 %573
    %v575 = vsel %vm565, %v562, 0.0
    %576 = vadd.xlane.f32.xlu0 %v575
    %v577 = vpop.xlane.xlu0 %576
    %v578 = vsel %vm565, %v563, 0.0
    %579 = vadd.xlane.f32.xlu0 %v578
    %v580 = vpop.xlane.xlu0 %579
    %v581 = vsel %vm565, %v564, 0.0
    %582 = vadd.xlane.f32.xlu0 %v581
    %v583 = vpop.xlane.xlu0 %582
    %v590 = vlaneseq
    %v591 = vand.u32 %v590, 127
    %v592 = vlaneseq
    %v593 = vshrl.u32 %v592, 7
    %v594 = vsub.s32 %v591, %v593
    %v595 = vrot.slane %v568, %v594
    %v596 = vadd.s32 %v591, 4294967288
    %v597 = vlaneseq
    %v598 = vshrl.u32 %v597, 7
    %v599 = vsub.s32 %v596, %v598
    %v600 = vrot.slane %v571, %v599
    %vm601 = vcmask 130112
    %v602 = vsel %vm601, %v600, %v595
    %v603 = vadd.s32 %v591, 4294967280
    %v604 = vlaneseq
    %v605 = vshrl.u32 %v604, 7
    %v606 = vsub.s32 %v603, %v605
    %v607 = vrot.slane %v574, %v606
    %vm608 = vcmask 195712
    %v609 = vsel %vm608, %v607, %v602
    %v610 = vlaneseq
    %v611 = vshrl.u32 %v610, 7
    %v612 = vsub.s32 %v591, %v611
    %v613 = vrot.slane %v577, %v612
    %v614 = vlaneseq
    %v615 = vshrl.u32 %v614, 7
    %v616 = vsub.s32 %v596, %v615
    %v617 = vrot.slane %v580, %v616
    %v618 = vsel %vm601, %v617, %v613
    %v619 = vlaneseq
    %v620 = vshrl.u32 %v619, 7
    %v621 = vsub.s32 %v603, %v620
    %v622 = vrot.slane %v583, %v621
    %v623 = vsel %vm608, %v622, %v618
    %vm624 = vcmask 1041409
    %v625 = vsel %vm624, %v623, %v609
    %vm627 = vcmask 189440
    %v628 = vsel %vm627, %v625, 0.0
    %629 = vadd.xlane.f32.xlu0 %v628
    %v630 = vpop.xlane.xlu0 %629
    %v631 = vmul.f32 %v541, %v38
    %v632 = vmul.f32 %v542, %v39
    %v633 = vmul.f32 %v543, %v40
    %v634 = vmul.f32 %v544, %v38
    %v635 = vmul.f32 %v545, %v39
    %v636 = vmul.f32 %v546, %v40
    %v637 = vmul.f32 %v436, %v44
    %v638 = vmul.f32 %v437, %v45
    %v639 = vmul.f32 %v438, %v46
    %v640 = vmul.f32 %v439, %v44
    %v641 = vmul.f32 %v440, %v45
    %v642 = vmul.f32 %v441, %v46
    %v643 = vadd.f32 %v631, %v637
    %v644 = vadd.f32 %v632, %v638
    %v645 = vadd.f32 %v633, %v639
    %v646 = vadd.f32 %v634, %v640
    %v647 = vadd.f32 %v635, %v641
    %v648 = vadd.f32 %v636, %v642
    %v649 = vsel %vm565, %v643, 0.0
    %650 = vadd.xlane.f32.xlu0 %v649
    %v651 = vpop.xlane.xlu0 %650
    %v652 = vsel %vm565, %v644, 0.0
    %653 = vadd.xlane.f32.xlu0 %v652
    %v654 = vpop.xlane.xlu0 %653
    %v655 = vsel %vm565, %v645, 0.0
    %656 = vadd.xlane.f32.xlu0 %v655
    %v657 = vpop.xlane.xlu0 %656
    %v658 = vsel %vm565, %v646, 0.0
    %659 = vadd.xlane.f32.xlu0 %v658
    %v660 = vpop.xlane.xlu0 %659
    %v661 = vsel %vm565, %v647, 0.0
    %662 = vadd.xlane.f32.xlu0 %v661
    %v663 = vpop.xlane.xlu0 %662
    %v664 = vsel %vm565, %v648, 0.0
    %665 = vadd.xlane.f32.xlu0 %v664
    %v666 = vpop.xlane.xlu0 %665
    %v673 = vlaneseq
    %v674 = vshrl.u32 %v673, 7
    %v675 = vsub.s32 %v591, %v674
    %v676 = vrot.slane %v651, %v675
    %v677 = vlaneseq
    %v678 = vshrl.u32 %v677, 7
    %v679 = vsub.s32 %v596, %v678
    %v680 = vrot.slane %v654, %v679
    %v681 = vsel %vm601, %v680, %v676
    %v682 = vlaneseq
    %v683 = vshrl.u32 %v682, 7
    %v684 = vsub.s32 %v603, %v683
    %v685 = vrot.slane %v657, %v684
    %v686 = vsel %vm608, %v685, %v681
    %v687 = vlaneseq
    %v688 = vshrl.u32 %v687, 7
    %v689 = vsub.s32 %v591, %v688
    %v690 = vrot.slane %v660, %v689
    %v691 = vlaneseq
    %v692 = vshrl.u32 %v691, 7
    %v693 = vsub.s32 %v596, %v692
    %v694 = vrot.slane %v663, %v693
    %v695 = vsel %vm601, %v694, %v690
    %v696 = vlaneseq
    %v697 = vshrl.u32 %v696, 7
    %v698 = vsub.s32 %v603, %v697
    %v699 = vrot.slane %v666, %v698
    %v700 = vsel %vm608, %v699, %v695
    %v701 = vsel %vm624, %v700, %v686
    %v703 = vsel %vm627, %v701, 0.0
    %704 = vadd.xlane.f32.xlu0 %v703
    %v705 = vpop.xlane.xlu0 %704
    %vm706 = vcmask 7168
    %v707 = vsel %vm706, %v630, %v705
    %v708 = vlaneseq
    %v709 = vshrl.u32 %v708, 7
    %v710 = vsub.s32 0, %v709
    %v711 = vrot.slane %v51, %v710
    %v712 = vadd.f32 %v707, %v711
    %vm713 = vcmask 9216
    %v714 = vsel %vm713, %v712, -inf
    %715 = vmax.xlane.f32.xlu0 %v714
    %v716 = vpop.xlane.xlu0 %715
    %v717 = vsub.f32 %v712, %v716
    %v718 = vmul.f32 %v717, 1.442695
    %v719 = vpow.pop %v718
    %v720 = vsel %vm713, %v719, 0.0
    %721 = vadd.xlane.f32.xlu0 %v720
    %v722 = vpop.xlane.xlu0 %721
    %v723 = vrcp.pop %v722
    %v724 = vmul.f32 %v719, %v723
    %725 = vst.msk [vmem:[#allocation2] sm:$0x3] %vm713, %v724
    // Predicated region
    $region10: #{forward_pallas.1} parent=1 // pred_check
      _
    $region11: #{forward_pallas.1} parent=1 // pred_check_branch
      %727 = sbr.rel (0) target = $region13
    $region12: #{forward_pallas.1} parent=1 // pred_region
      %s729 = ssub.s32 32, 32
      %730 = vsyncadd [#allocation3], %s729
      %s732 = sshll.u32 [#allocation2], 4
      %s733 = int_to_ptr.vmem [resolvable:$true] %s732
      %735 = dma.vmem_to_hbm [thread:$0]  %s733, 32, %s2, [#allocation3]
    $region13: #{forward_pallas.1} parent=1 // pred_fallthru
      _
    // Predicated region
    $region14: #{forward_pallas.1} parent=1 // pred_check
      _
    $region15: #{forward_pallas.1} parent=1 // pred_check_branch
      %737 = sbr.rel (0) target = $region17
    $region16: #{forward_pallas.1} parent=1 // pred_region
      %738 = dma.done [#allocation3], 32
    $region17: #{forward_pallas.1} parent=1 // pred_fallthru
      _
    %739 = vsyncpa [#allocation3], 1

</llo_original>
